<compile_context>
chip_gen: v5e
topology: v5e:2x2
jax: 0.10.0
libtpu: 0.0.40
codegen_flags: <defaults>
</compile_context>

<pallas_src>
import math

import jax
import jax.numpy as jnp
from jax.experimental import pallas as pl
from jax.experimental.pallas import tpu as pltpu


def _round_up(x, m):
    return ((x + m - 1) // m) * m


def _sublane(dtype):
    # Sublane packing quantum: 8 rows for 32-bit, 16 for 16-bit, 32 for 8-bit dtypes.
    return max(8, 32 // jnp.dtype(dtype).itemsize)


def rmse(outputs, target, *, target_block_bytes=2 * 1024 * 1024):
    """Masked RMSE (PyTorch RMSE.forward). Returns a float32 scalar."""
    assert outputs.shape == target.shape, (outputs.shape, target.shape)
    B = outputs.shape[0]
    N = math.prod(outputs.shape[1:])
    assert N > 0

    sublane = max(_sublane(outputs.dtype), _sublane(target.dtype))
    quantum = sublane * 128

    if N % quantum == 0:
        # Copy-free reshape: no extra HBM traffic before the kernel.
        R = N // 128

        def prep(x):
            return x.reshape(B, R, 128)
    else:
        # Truly ragged N: one minimal pad up to the sublane*lane quantum is unavoidable
        # for a lane-dense layout.  Zero padding is safe: (0 > 0) is False, so padded
        # pixels contribute to neither the error sum nor the valid-pixel count.
        n_pad = _round_up(N, quantum)
        R = n_pad // 128

        def prep(x):
            x2 = x.reshape(B, N)
            x2 = jnp.pad(x2, ((0, 0), (0, n_pad - N)))
            return x2.reshape(B, R, 128)

    # Byte-based tile cap: ~target_block_bytes of f32 working set per tile (inputs are
    # cast to f32 in-kernel, which is what bounds VMEM/vreg pressure).  Default 2 MiB
    # -> tile_rows = 4096 (2 MiB f32 / 1 MiB bf16 input blocks).  Always a multiple of
    # the sublane quantum (BlockSpec (8,128) rule + the reshape(k,8,128) fold).
    cap_rows = max(sublane, (target_block_bytes // (128 * 4)) // sublane * sublane)
    tile_rows = min(cap_rows, R)                 # both are multiples of `sublane`
    num_tiles = pl.cdiv(R, tile_rows)

    # Optional 2-way "parallel" split of the reduction tiles so both v7x TensorCores
    # get work when B is odd (B=1 in particular).  Only enabled when it divides the
    # tile count exactly, so it is free (no duplicated DMA) on single-core chips.
    splits = 2 if (B % 2 == 1 and num_tiles % 2 == 0) else 1
    tps = num_tiles // splits                    # tiles per split

    out3d = prep(outputs)
    tgt3d = prep(target)

    def kernel(out_ref, tgt_ref, acc_ref):
        # out_ref / tgt_ref : (1, tile_rows, 128) input tiles in VMEM.
        # acc_ref           : (1, 1, 16, 128) fused f32 accumulator (output block):
        #                     err in sublanes 0-7, valid-count in 8-15, resident in
        #                     VMEM across the reduction (last) grid axis.
        s = pl.program_id(0)
        r = pl.program_id(2)

        @pl.when(r == 0)
        def _init():
            acc_ref[...] = jnp.zeros_like(acc_ref)

        t = tgt_ref[0].astype(jnp.float32)       # (tile_rows, 128)
        o = out_ref[0].astype(jnp.float32)

        # In-kernel tail mask: rows past R in a partial last tile hold unspecified
        # data; the iota compare gates BOTH the error term and the count.
        row0 = (s * tps + r) * tile_rows
        row_ids = row0 + jax.lax.broadcasted_iota(jnp.int32, (tile_rows, 128), 0)
        valid = (t > 0.0) & (row_ids < R)

        diff = jnp.where(valid, t - o, 0.0)      # masked difference: one sub + select
        err = diff * diff
        cnt = jnp.where(valid, 1.0, 0.0)

        # Fold tile_rows down to 8 sublanes with elementwise vreg adds (VPU only);
        # the cross-lane (XLU) reduce is deferred entirely to the tiny wrapper sum.
        k = tile_rows // 8
        acc_ref[0, 0, 0:8, :] += jnp.sum(err.reshape(k, 8, 128), axis=0)
        acc_ref[0, 0, 8:16, :] += jnp.sum(cnt.reshape(k, 8, 128), axis=0)

    in_bytes = jnp.dtype(outputs.dtype).itemsize + jnp.dtype(target.dtype).itemsize
    cost = pl.CostEstimate(
        flops=6 * B * R * 128,
        transcendentals=0,
        bytes_accessed=B * R * 128 * in_bytes + splits * B * 16 * 128 * 4,
    )

    acc = pl.pallas_call(
        kernel,
        out_shape=jax.ShapeDtypeStruct((splits, B, 16, 128), jnp.float32),
        grid_spec=pltpu.PrefetchScalarGridSpec(
            num_scalar_prefetch=0,
            grid=(splits, B, tps),               # pixel-tile reduction axis last
            in_specs=[
                pl.BlockSpec((1, tile_rows, 128), lambda s, b, r: (b, s * tps + r, 0)),
                pl.BlockSpec((1, tile_rows, 128), lambda s, b, r: (b, s * tps + r, 0)),
            ],
            out_specs=pl.BlockSpec((1, 1, 16, 128), lambda s, b, r: (s, b, 0, 0)),
        ),
        compiler_params=pltpu.CompilerParams(
            dimension_semantics=("parallel", "parallel", "arbitrary"),
            vmem_limit_bytes=32 * 1024 * 1024,   # >= v5e's 16 MiB default, <= v7x's 64 MiB
        ),
        cost_estimate=cost,
    )(out3d, tgt3d)

    # Tiny final combine (O(B*2048) elements): fold the split axis, cross-lane reduce
    # per batch, per-batch sqrt(loss/cnt), mean over batch — plain-JAX glue.
    acc = jnp.sum(acc, axis=0)                   # (B, 16, 128)
    loss = jnp.sum(acc[:, 0:8, :].reshape(B, -1), axis=-1)
    cnt = jnp.sum(acc[:, 8:16, :].reshape(B, -1), axis=-1)
    # NOTE: cnt == 0 (a batch with no valid pixels) yields NaN, matching PyTorch.
    return jnp.mean(jnp.sqrt(loss / cnt))


def _reference(outputs, target):
    # Pure-JAX reference of the PyTorch forward.
    B = outputs.shape[0]
    mask = (target > 0).astype(jnp.float32)
    err = (target * mask - outputs * mask) ** 2
    loss = jnp.sum(err.reshape(B, 1, -1), axis=-1, keepdims=True)
    cnt = jnp.sum(mask.reshape(B, 1, -1), axis=-1, keepdims=True)
    return jnp.mean(jnp.sqrt(loss / cnt))


if __name__ == "__main__":
    key = jax.random.PRNGKey(0)
    k1, k2, k3, k4, k5, k6 = jax.random.split(key, 6)

    # 1) Small canonical shape (B=2, C=4, 16x16); N % (sublane*128) == 0 -> no pad.
    o1 = jax.random.normal(k1, (2, 4, 16, 16), dtype=jnp.float32)
    t1 = jax.random.normal(k2, (2, 4, 16, 16), dtype=jnp.float32)
    r1 = rmse(o1, t1)
    jax.block_until_ready(r1)
    assert r1.shape == ()
    assert jnp.allclose(r1, _reference(o1, t1), rtol=1e-5, atol=1e-5), r1

    # 2) Ragged N (minimal-pad path + mask of zero-padded pixels).
    o2 = jax.random.normal(k3, (3, 1, 17, 19), dtype=jnp.float32)
    t2 = jax.random.normal(k4, (3, 1, 17, 19), dtype=jnp.float32)
    r2 = rmse(o2, t2)
    jax.block_until_ready(r2)
    assert jnp.allclose(r2, _reference(o2, t2), rtol=1e-5, atol=1e-5), r2

    # 3) Multi-tile with a partial last tile (exercises the in-kernel row mask) via a
    #    deliberately tiny block-byte budget: R=120 rows, tile_rows=64 -> 2 tiles.
    o3 = jax.random.normal(k5, (2, 3, 40, 128), dtype=jnp.float32)
    t3 = jax.random.normal(k6, (2, 3, 40, 128), dtype=jnp.float32)
    r3 = rmse(o3, t3, target_block_bytes=32 * 1024)
    jax.block_until_ready(r3)
    assert jnp.allclose(r3, _reference(o3, t3), rtol=1e-5, atol=1e-5), r3

    # 4) Odd batch with an even tile count (exercises the dual-core split path).
    o4 = jax.random.normal(k1, (1, 2, 64, 128), dtype=jnp.float32)
    t4 = jax.random.normal(k2, (1, 2, 64, 128), dtype=jnp.float32)
    r4 = rmse(o4, t4, target_block_bytes=64 * 128 * 4)
    jax.block_until_ready(r4)
    assert jnp.allclose(r4, _reference(o4, t4), rtol=1e-5, atol=1e-5), r4

    print("KERNEL_OK")
</pallas_src>

<mosaic_0001>
module attributes {stable_mosaic.version = 11 : i64} {
  func.func @kernel(%arg0: i32, %arg1: i32, %arg2: i32, %arg3: memref<1x8x128xf32, #tpu.memory_space<vmem>>, %arg4: memref<1x8x128xf32, #tpu.memory_space<vmem>>, %arg5: memref<1x1x16x128xf32, #tpu.memory_space<vmem>>) attributes {dimension_semantics = [#tpu.dimension_semantics<parallel>, #tpu.dimension_semantics<parallel>, #tpu.dimension_semantics<arbitrary>], iteration_bounds = array<i64: 1, 2, 1>, scalar_prefetch = 0 : i64, scratch_operands = 0 : i64, tpu.core_type = #tpu.core_type<tc>, window_params = [{transform_indices = @transform_0, window_bounds = array<i64: 1, 8, 128>}, {transform_indices = @transform_1, window_bounds = array<i64: 1, 8, 128>}, {transform_indices = @transform_2, window_bounds = array<i64: 1, 1, 16, 128>}]} {
    %c0_i32 = arith.constant 0 : i32
    %0 = arith.cmpi eq, %arg2, %c0_i32 : i32
    %1 = arith.extui %0 : i1 to i32
    %c0_i32_0 = arith.constant 0 : i32
    %2 = arith.cmpi ne, %1, %c0_i32_0 : i32
    scf.if %2 {
      %cst_27 = arith.constant 0.000000e+00 : f32
      %41 = vector.broadcast %cst_27 : f32 to vector<1x1x16x128xf32>
      %c0_28 = arith.constant 0 : index
      %c0_29 = arith.constant 0 : index
      %c0_30 = arith.constant 0 : index
      %c0_31 = arith.constant 0 : index
      %42 = vector.load %arg5[%c0_28, %c0_29, %c0_30, %c0_31] : memref<1x1x16x128xf32, #tpu.memory_space<vmem>>, vector<1x1x16x128xf32>
      tpu.vector_store %arg5[%c0_28, %c0_29, %c0_30, %c0_31], %41 {strides = array<i32>} : memref<1x1x16x128xf32, #tpu.memory_space<vmem>>, vector<1x1x16x128xf32>,
    } else {
    }
    %c0 = arith.constant 0 : index
    %c0_1 = arith.constant 0 : index
    %c0_2 = arith.constant 0 : index
    %3 = vector.load %arg4[%c0, %c0_1, %c0_2] : memref<1x8x128xf32, #tpu.memory_space<vmem>>, vector<1x8x128xf32>
    %4 = vector.shape_cast %3 : vector<1x8x128xf32> to vector<8x128xf32>
    %c0_3 = arith.constant 0 : index
    %c0_4 = arith.constant 0 : index
    %c0_5 = arith.constant 0 : index
    %5 = vector.load %arg3[%c0_3, %c0_4, %c0_5] : memref<1x8x128xf32, #tpu.memory_space<vmem>>, vector<1x8x128xf32>
    %6 = vector.shape_cast %5 : vector<1x8x128xf32> to vector<8x128xf32>
    %c1_i32 = arith.constant 1 : i32
    %7 = arith.muli %arg0, %c1_i32 : i32
    %8 = arith.addi %7, %arg2 : i32
    %c8_i32 = arith.constant 8 : i32
    %9 = arith.muli %8, %c8_i32 : i32
    %10 = tpu.iota {dimensions = array<i32: 0>} : vector<8x128xi32>
    %11 = vector.broadcast %9 : i32 to vector<8x128xi32>
    %12 = arith.addi %11, %10 : vector<8x128xi32>
    %cst = arith.constant 0.000000e+00 : f32
    %13 = vector.broadcast %cst : f32 to vector<8x128xf32>
    %14 = arith.cmpf ogt, %4, %13 : vector<8x128xf32>
    %c8_i32_6 = arith.constant 8 : i32
    %15 = vector.broadcast %c8_i32_6 : i32 to vector<8x128xi32>
    %16 = arith.cmpi slt, %12, %15 : vector<8x128xi32>
    %17 = arith.andi %14, %16 : vector<8x128xi1>
    %18 = arith.subf %4, %6 : vector<8x128xf32>
    %cst_7 = arith.constant 0.000000e+00 : f32
    %19 = vector.broadcast %cst_7 : f32 to vector<8x128xf32>
    %20 = arith.select %17, %18, %19 : vector<8x128xi1>, vector<8x128xf32>
    %21 = arith.mulf %20, %20 : vector<8x128xf32>
    %cst_8 = arith.constant 1.000000e+00 : f32
    %cst_9 = arith.constant 0.000000e+00 : f32
    %22 = vector.broadcast %cst_8 : f32 to vector<8x128xf32>
    %23 = vector.broadcast %cst_9 : f32 to vector<8x128xf32>
    %24 = arith.select %17, %22, %23 : vector<8x128xi1>, vector<8x128xf32>
    %c0_10 = arith.constant 0 : index
    %c0_11 = arith.constant 0 : index
    %c0_12 = arith.constant 0 : index
    %c0_13 = arith.constant 0 : index
    %25 = vector.load %arg5[%c0_10, %c0_11, %c0_12, %c0_13] : memref<1x1x16x128xf32, #tpu.memory_space<vmem>>, vector<1x1x8x128xf32>
    %26 = vector.shape_cast %25 : vector<1x1x8x128xf32> to vector<8x128xf32>
    %27 = vector.shape_cast %21 : vector<8x128xf32> to vector<1x8x128xf32>
    %cst_14 = arith.constant dense<0.000000e+00> : vector<8x128xf32>
    %28 = vector.multi_reduction <add>, %27, %cst_14 [0] : vector<1x8x128xf32> to vector<8x128xf32>
    %29 = arith.addf %26, %28 : vector<8x128xf32>
    %c0_15 = arith.constant 0 : index
    %c0_16 = arith.constant 0 : index
    %c0_17 = arith.constant 0 : index
    %c0_18 = arith.constant 0 : index
    %30 = vector.load %arg5[%c0_15, %c0_16, %c0_17, %c0_18] : memref<1x1x16x128xf32, #tpu.memory_space<vmem>>, vector<1x1x8x128xf32>
    %31 = vector.shape_cast %30 : vector<1x1x8x128xf32> to vector<8x128xf32>
    %32 = vector.shape_cast %29 : vector<8x128xf32> to vector<1x1x8x128xf32>
    tpu.vector_store %arg5[%c0_15, %c0_16, %c0_17, %c0_18], %32 {strides = array<i32>} : memref<1x1x16x128xf32, #tpu.memory_space<vmem>>, vector<1x1x8x128xf32>,
    %c0_19 = arith.constant 0 : index
    %c0_20 = arith.constant 0 : index
    %c8 = arith.constant 8 : index
    %c0_21 = arith.constant 0 : index
    %33 = vector.load %arg5[%c0_19, %c0_20, %c8, %c0_21] : memref<1x1x16x128xf32, #tpu.memory_space<vmem>>, vector<1x1x8x128xf32>
    %34 = vector.shape_cast %33 : vector<1x1x8x128xf32> to vector<8x128xf32>
    %35 = vector.shape_cast %24 : vector<8x128xf32> to vector<1x8x128xf32>
    %cst_22 = arith.constant dense<0.000000e+00> : vector<8x128xf32>
    %36 = vector.multi_reduction <add>, %35, %cst_22 [0] : vector<1x8x128xf32> to vector<8x128xf32>
    %37 = arith.addf %34, %36 : vector<8x128xf32>
    %c0_23 = arith.constant 0 : index
    %c0_24 = arith.constant 0 : index
    %c8_25 = arith.constant 8 : index
    %c0_26 = arith.constant 0 : index
    %38 = vector.load %arg5[%c0_23, %c0_24, %c8_25, %c0_26] : memref<1x1x16x128xf32, #tpu.memory_space<vmem>>, vector<1x1x8x128xf32>
    %39 = vector.shape_cast %38 : vector<1x1x8x128xf32> to vector<8x128xf32>
    %40 = vector.shape_cast %37 : vector<8x128xf32> to vector<1x1x8x128xf32>
    tpu.vector_store %arg5[%c0_23, %c0_24, %c8_25, %c0_26], %40 {strides = array<i32>} : memref<1x1x16x128xf32, #tpu.memory_space<vmem>>, vector<1x1x8x128xf32>,
    return
  }
  func.func @transform_0(%arg0: i32, %arg1: i32, %arg2: i32) -> (i32, i32, i32) {
    %c1_i32 = arith.constant 1 : i32
    %0 = arith.muli %arg0, %c1_i32 : i32
    %1 = arith.addi %0, %arg2 : i32
    %c0_i32 = arith.constant 0 : i32
    %c0_i32_0 = arith.constant 0 : i32
    return %arg1, %1, %c0_i32 : i32, i32, i32
  }
  func.func @transform_1(%arg0: i32, %arg1: i32, %arg2: i32) -> (i32, i32, i32) {
    %c1_i32 = arith.constant 1 : i32
    %0 = arith.muli %arg0, %c1_i32 : i32
    %1 = arith.addi %0, %arg2 : i32
    %c0_i32 = arith.constant 0 : i32
    %c0_i32_0 = arith.constant 0 : i32
    return %arg1, %1, %c0_i32 : i32, i32, i32
  }
  func.func @transform_2(%arg0: i32, %arg1: i32, %arg2: i32) -> (i32, i32, i32, i32) {
    %c0_i32 = arith.constant 0 : i32
    %c0_i32_0 = arith.constant 0 : i32
    %c0_i32_1 = arith.constant 0 : i32
    return %arg0, %arg1, %c0_i32, %c0_i32_0 : i32, i32, i32, i32
  }
}

</mosaic_0001>

<llo_original>
// kernel: tpu_custom_call.1
$region0: #{tpu_custom_call.1}
  #allocation0 [shape = 'u32[]', space=smem, size = 0x4, offset = 0x4, fixed_abs, tag = 'smem constant byte address 0x4 - core index']
  #allocation1 [shape = 'u32[72,128]{1,0:T(1,128)}', space=vmem, size = 0x9000, scoped, tag = 'internal scratch']
  %s0 = inlined_call_operand.hbm [shape: f32[2,8,128], index: 0, kind: input, shape index: {}]
  %s1 = inlined_call_operand.hbm [shape: f32[2,8,128], index: 1, kind: input, shape index: {}]
  %s2 = inlined_call_operand.hbm [shape: f32[1,2,16,128], index: 2, kind: output, shape index: {}]
  %s3 = sld [smem:[#allocation0]]
  $region53: #{tpu_custom_call.1} parent=0
    _
  %s5 = ssub.s32 1, %s3
  %s6 = scalar_select 0, %s5, %s3
  $region1: #{tpu_custom_call.1} parent=0
    #allocation2 [shape = 'u8[8192]{0}', space=vmem, size = 0x2000, scoped, tag = 'input window, operand 0']
    #allocation3 [shape = 's32[2]{0}', space=sflag, size = 0x8, scoped, tag = 'scoped memory for tpu_custom_call.1']
    #allocation4 [shape = 's32[2]{0}', space=sflag, size = 0x8, scoped, tag = 'scoped memory for tpu_custom_call.1']
    #allocation5 [shape = 'u8[8192]{0}', space=vmem, size = 0x2000, scoped, tag = 'input window, operand 1']
    #allocation6 [shape = 's32[2]{0}', space=sflag, size = 0x8, scoped, tag = 'scoped memory for tpu_custom_call.1']
    #allocation7 [shape = 'u8[16384]{0}', space=vmem, size = 0x4000, scoped, tag = 'output window, operand 0']
    %7 = vsyncpa [#allocation3], 0
    %s8 = scalar_lea.sflag [#allocation3], 1
    %9 = vsyncpa %s8, 0
    %10 = vsyncpa [#allocation6], 0
    %s11 = scalar_lea.sflag [#allocation6], 1
    %12 = vsyncpa %s11, 0
    %13 = vsyncpa [#allocation4], 0
    %s14 = scalar_lea.sflag [#allocation4], 1
    %15 = vsyncpa %s14, 0
    loop: start=0, step=1, limit=4
    $region2: #{tpu_custom_call.1} parent=1 // loop_pre_header
      _
    $region3: #{tpu_custom_call.1} parent=1 // loop_header
      %s17 = sphi 0, %s21
      %p18 = scmp.ge.s32.totalorder %s17, 4
      %s24 = sphi 0, %s43
      %s25 = sphi 0, %s39
      %s26 = sphi 0, %s35
      %s27 = sphi 0, %s24
      %s28 = sphi 0, %s25
      %s29 = sphi 0, %s26
      %s30 = sphi 0, %s27
      %s31 = sphi 0, %s28
      %s32 = sphi 0, %s29
      %s50 = sphi 0, %s52
      %s53 = sphi 0, %s50
      %s54 = sphi 0, %s53
      %s70 = sphi 0, %s54
      %s80 = sphi 0, %s82
      %s83 = sphi 0, %s80
      %s84 = sphi 0, %s83
      %s100 = sphi 0, %s84
      %s108 = sphi 0, %s110
      %s111 = sphi 0, %s108
      %s112 = sphi 0, %s111
      %s128 = sphi 0, %s112
    $region4: #{tpu_custom_call.1} parent=1 // loop_header_branch
      %20 = sbr.rel (%p18) target = $region8
    $region5: #{tpu_custom_call.1} parent=1 // loop_body
      %s22 = ssub.s32 %s17, 1
      %s23 = ssub.s32 %s17, 2
      %s33 = sadd.s32 1, %s26
      %p34 = scmp.ge.s32.totalorder %s33, 1
      %s35 = scalar_select %p34, 0, %s33
      %s36 = sadd.s32 1, %s25
      %s37 = scalar_select %p34, %s36, %s25
      %p38 = scmp.ge.s32.totalorder %s37, 2
      %s39 = scalar_select %p38, 0, %s37
      %s40 = sadd.s32 1, %s24
      %s41 = scalar_select %p38, %s40, %s24
      %p42 = scmp.ge.s32.totalorder %s41, 1
      %s43 = scalar_select %p42, 0, %s41
      %s44 = sadd.s32 %s24, %s26
      %s45 = sadd.s32 %s43, %s35
      %s46 = ssub.s32 %s25, %s39
      %s47 = ssub.s32 %s44, %s45
      %s48 = sor.u32 %s46, %s47
      %p49 = scmp.eq.s32.totalorder %s48, 0
      %s51 = sadd.s32 %s50, 1
      %s52 = scalar_select %p49, %s50, %s51
      %p55 = pneg %p49
      %p56 = scmp.eq.s32.totalorder %s17, 1
      %p57 = por %p55, %p56
      %p58 = scmp.ne.s32.totalorder %s50, %s53
      %p59 = scmp.eq.s32.totalorder %s17, 0
      %p60 = por %p58, %p59
      %p61 = scmp.ne.s32.totalorder %s50, %s53
      %p62 = scmp.eq.s32.totalorder %s22, 1
      %p63 = por %p61, %p62
      %p64 = scmp.ne.s32.totalorder %s53, %s54
      %p65 = scmp.eq.s32.totalorder %s22, 0
      %p66 = por %p64, %p65
      %p67 = scmp.ne.s32.totalorder %s53, %s54
      %p68 = scmp.eq.s32.totalorder %s23, 1
      %p69 = por %p67, %p68
      %p71 = scmp.ne.s32.totalorder %s54, %s70
      %p72 = scmp.eq.s32.totalorder %s23, 0
      %p73 = por %p71, %p72
      %s74 = sadd.s32 %s24, %s26
      %s75 = sadd.s32 %s43, %s35
      %s76 = ssub.s32 %s25, %s39
      %s77 = ssub.s32 %s74, %s75
      %s78 = sor.u32 %s76, %s77
      %p79 = scmp.eq.s32.totalorder %s78, 0
      %s81 = sadd.s32 %s80, 1
      %s82 = scalar_select %p79, %s80, %s81
      %p85 = pneg %p79
      %p86 = scmp.eq.s32.totalorder %s17, 1
      %p87 = por %p85, %p86
      %p88 = scmp.ne.s32.totalorder %s80, %s83
      %p89 = scmp.eq.s32.totalorder %s17, 0
      %p90 = por %p88, %p89
      %p91 = scmp.ne.s32.totalorder %s80, %s83
      %p92 = scmp.eq.s32.totalorder %s22, 1
      %p93 = por %p91, %p92
      %p94 = scmp.ne.s32.totalorder %s83, %s84
      %p95 = scmp.eq.s32.totalorder %s22, 0
      %p96 = por %p94, %p95
      %p97 = scmp.ne.s32.totalorder %s83, %s84
      %p98 = scmp.eq.s32.totalorder %s23, 1
      %p99 = por %p97, %p98
      %p101 = scmp.ne.s32.totalorder %s84, %s100
      %p102 = scmp.eq.s32.totalorder %s23, 0
      %p103 = por %p101, %p102
      %s104 = ssub.s32 %s24, %s43
      %s105 = ssub.s32 %s25, %s39
      %s106 = sor.u32 %s104, %s105
      %p107 = scmp.eq.s32.totalorder %s106, 0
      %s109 = sadd.s32 %s108, 1
      %s110 = scalar_select %p107, %s108, %s109
      %p113 = pneg %p107
      %p114 = scmp.eq.s32.totalorder %s17, 1
      %p115 = por %p113, %p114
      %p116 = scmp.ne.s32.totalorder %s108, %s111
      %p117 = scmp.eq.s32.totalorder %s17, 0
      %p118 = por %p116, %p117
      %p119 = scmp.ne.s32.totalorder %s108, %s111
      %p120 = scmp.eq.s32.totalorder %s22, 1
      %p121 = por %p119, %p120
      %p122 = scmp.ne.s32.totalorder %s111, %s112
      %p123 = scmp.eq.s32.totalorder %s22, 0
      %p124 = por %p122, %p123
      %p125 = scmp.ne.s32.totalorder %s111, %s112
      %p126 = scmp.eq.s32.totalorder %s23, 1
      %p127 = por %p125, %p126
      %p129 = scmp.ne.s32.totalorder %s112, %s128
      %p130 = scmp.eq.s32.totalorder %s23, 0
      %p131 = por %p129, %p130
      %p132 = scmp.le.s32.totalorder 1, %s17
      %p133 = scmp.lt.s32.totalorder %s17, 3
      %p134 = pnand %p132, %p133
      %p135 = pneg %p134
      // Predicated region
      $region9: #{tpu_custom_call.1} parent=5 // pred_check
        _
      $region10: #{tpu_custom_call.1} parent=5 // pred_check_branch
        %137 = sbr.rel (%p134) target = $region12
      $region11: #{tpu_custom_call.1} parent=5 // pred_region
        %s138 = ssub.s32 %s17, 1
      $region12: #{tpu_custom_call.1} parent=5 // pred_fallthru
        _
      %p139 = scmp.lt.s32.totalorder %s17, 2
      // Predicated region
      $region13: #{tpu_custom_call.1} parent=5 // pred_check
        %p140 = pneg %p139
      $region14: #{tpu_custom_call.1} parent=5 // pred_check_branch
        %142 = sbr.rel (%p140) target = $region16
      $region15: #{tpu_custom_call.1} parent=5 // pred_region
        // Predicated region
        $region17: #{tpu_custom_call.1} parent=15 // pred_check
          %p143 = pneg %p60
        $region18: #{tpu_custom_call.1} parent=15 // pred_check_branch
          %145 = sbr.rel (%p143) target = $region20
        $region19: #{tpu_custom_call.1} parent=15 // pred_region
          %s146 = sand.u32 %s50, 1
          %s147 = scalar_lea.sflag [#allocation3], %s146
          %s148 = sand.u32 %s50, 1
          %s149 = smul.addr %s148, 8
          %s150 = scalar_lea.vmem [#allocation2], %s149
          %s151 = sadd.s32 %s24, %s26
          %153 = vsyncadd %s147, 0
          %s154 = sadd.s32 %s151, %s25
          %s155 = smul.addr %s154, 8
          %s156 = scalar_lea.hbm %s0, %s155
          %s158 = sshll.u32 %s156, 4
          %s159 = int_to_ptr.hbm [resolvable:$true] %s158
          %s160 = sshll.u32 %s150, 4
          %s161 = int_to_ptr.vmem [resolvable:$true] %s160
          %163 = dma.hbm_to_vmem [thread:$0]  %s159, 128, %s161, %s147
        $region20: #{tpu_custom_call.1} parent=15 // pred_fallthru
          _
        // Predicated region
        $region21: #{tpu_custom_call.1} parent=15 // pred_check
          %p164 = pneg %p90
        $region22: #{tpu_custom_call.1} parent=15 // pred_check_branch
          %166 = sbr.rel (%p164) target = $region24
        $region23: #{tpu_custom_call.1} parent=15 // pred_region
          %s167 = sand.u32 %s80, 1
          %s168 = scalar_lea.sflag [#allocation6], %s167
          %s169 = sand.u32 %s80, 1
          %s170 = smul.addr %s169, 8
          %s171 = scalar_lea.vmem [#allocation5], %s170
          %s172 = sadd.s32 %s24, %s26
          %174 = vsyncadd %s168, 0
          %s175 = sadd.s32 %s172, %s25
          %s176 = smul.addr %s175, 8
          %s177 = scalar_lea.hbm %s1, %s176
          %s179 = sshll.u32 %s177, 4
          %s180 = int_to_ptr.hbm [resolvable:$true] %s179
          %s181 = sshll.u32 %s171, 4
          %s182 = int_to_ptr.vmem [resolvable:$true] %s181
          %184 = dma.hbm_to_vmem [thread:$0]  %s180, 128, %s182, %s168
        $region24: #{tpu_custom_call.1} parent=15 // pred_fallthru
          _
      $region16: #{tpu_custom_call.1} parent=5 // pred_fallthru
        _
      %p185 = scmp.le.s32.totalorder 1, %s17
      %p186 = scmp.lt.s32.totalorder %s17, 3
      %p187 = pnand %p185, %p186
      %p188 = pneg %p187
      // Predicated region
      $region25: #{tpu_custom_call.1} parent=5 // pred_check
        _
      $region26: #{tpu_custom_call.1} parent=5 // pred_check_branch
        %190 = sbr.rel (%p187) target = $region28
      $region27: #{tpu_custom_call.1} parent=5 // pred_region
        %s191 = ssub.s32 %s17, 1
        %s192 = sand.u32 %s53, 1
        %s193 = scalar_lea.sflag [#allocation3], %s192
        %s194 = sand.u32 %s53, 1
        %s195 = smul.addr %s194, 8
        %s196 = scalar_lea.vmem [#allocation2], %s195
        // Predicated region
        $region29: #{tpu_custom_call.1} parent=27 // pred_check
          %p197 = pneg %p66
        $region30: #{tpu_custom_call.1} parent=27 // pred_check_branch
          %199 = sbr.rel (%p197) target = $region32
        $region31: #{tpu_custom_call.1} parent=27 // pred_region
          %201 = dma.done %s193, 128
        $region32: #{tpu_custom_call.1} parent=27 // pred_fallthru
          _
        %s202 = sand.u32 %s83, 1
        %s203 = scalar_lea.sflag [#allocation6], %s202
        %s204 = sand.u32 %s83, 1
        %s205 = smul.addr %s204, 8
        %s206 = scalar_lea.vmem [#allocation5], %s205
        // Predicated region
        $region33: #{tpu_custom_call.1} parent=27 // pred_check
          %p207 = pneg %p96
        $region34: #{tpu_custom_call.1} parent=27 // pred_check_branch
          %209 = sbr.rel (%p207) target = $region36
        $region35: #{tpu_custom_call.1} parent=27 // pred_region
          %211 = dma.done %s203, 128
        $region36: #{tpu_custom_call.1} parent=27 // pred_fallthru
          _
        %s212 = sand.u32 %s53, 1
        %s213 = scalar_lea.sflag [#allocation3], %s212
        %s214 = sand.u32 %s53, 1
        %s215 = smul.addr %s214, 8
        %s216 = scalar_lea.vmem [#allocation2], %s215
        %p217 = pneg %p66
        %p218 = pneg %p63
        %s219 = sand.u32 %s83, 1
        %s220 = scalar_lea.sflag [#allocation6], %s219
        %s221 = sand.u32 %s83, 1
        %s222 = smul.addr %s221, 8
        %s223 = scalar_lea.vmem [#allocation5], %s222
        %p224 = pneg %p96
        %p225 = pneg %p93
        %p226 = pneg %p124
        %p227 = pneg %p121
        %s228 = sand.u32 %s111, 1
        %s229 = scalar_lea.sflag [#allocation4], %s228
        %s230 = sand.u32 %s111, 1
        %s231 = smul.addr %s230, 16
        %s232 = scalar_lea.vmem [#allocation7], %s231
        %s233 = sadd.s32 %s27, %s29
        %s234 = sadd.s32 %s27, %s29
        %p235 = scmp.eq.s32.totalorder %s29, 0
        // Predicated region
        $region37: #{tpu_custom_call.1} parent=27 // pred_check
          %p236 = pneg %p235
        $region38: #{tpu_custom_call.1} parent=27 // pred_check_branch
          %238 = sbr.rel (%p236) target = $region40
        $region39: #{tpu_custom_call.1} parent=27 // pred_region
          %239 = vst [vmem:[%s232] sm:$0xff] 0.0
          %240 = vst [vmem:[%s232 + $0x8] sm:$0xff] 0.0
        $region40: #{tpu_custom_call.1} parent=27 // pred_fallthru
          _
        %v241 = vld [vmem:[%s206] sm:$0xff]
        %v242 = vld [vmem:[%s196] sm:$0xff]
        %s243 = sadd.s32 %s27, %s29
        %s244 = smul.u32 %s243, 8
        %v245 = vlaneseq
        %v246 = vshrl.u32 %v245, 7
        %v247 = vstv %s244
        %v248 = vadd.s32 %v247, %v246
        %vm249 = vcmp.gt.f32.partialorder %v241, 0.0
        %vm250 = vcmp.lt.s32.totalorder %v248, 8
        %vm251 = vmand %vm249, %vm250
        %v252 = vsub.f32 %v241, %v242
        %v253 = vsel %vm251, %v252, 0.0
        %v254 = vmul.f32 %v253, %v253
        %v255 = vsel %vm251, 1.0, 0.0
        %v256 = vld [vmem:[%s232] sm:$0xff]
        %v257 = vadd.f32 %v254, 0.0
        %v258 = vadd.f32 %v256, %v257
        %259 = vst [vmem:[%s232] sm:$0xff] %v258
        %v260 = vld [vmem:[%s232 + $0x8] sm:$0xff]
        %v261 = vadd.f32 %v255, 0.0
        %v262 = vadd.f32 %v260, %v261
        %263 = vst [vmem:[%s232 + $0x8] sm:$0xff] %v262
        %s264 = sand.u32 %s111, 1
        %s265 = scalar_lea.sflag [#allocation4], %s264
        %s266 = sand.u32 %s111, 1
        %s267 = smul.addr %s266, 16
        %s268 = scalar_lea.vmem [#allocation7], %s267
        // Predicated region
        $region41: #{tpu_custom_call.1} parent=27 // pred_check
          %p269 = pneg %p121
        $region42: #{tpu_custom_call.1} parent=27 // pred_check_branch
          %271 = sbr.rel (%p269) target = $region44
        $region43: #{tpu_custom_call.1} parent=27 // pred_region
          %273 = vsyncadd %s265, 0
          %s274 = smul.addr %s28, 2
          %s275 = smul.addr %s27, 4
          %s276 = sadd.s32 %s274, %s275
          %s277 = smul.addr %s276, 8
          %s278 = scalar_lea.hbm %s2, %s277
          %s279 = sshll.u32 %s268, 4
          %s280 = int_to_ptr.vmem [resolvable:$true] %s279
          %s281 = sshll.u32 %s278, 4
          %s282 = int_to_ptr.hbm [resolvable:$true] %s281
          %287 = dma.vmem_to_hbm [thread:$0]  %s280, 256, %s282, %s265, 128, 128, 8
        $region44: #{tpu_custom_call.1} parent=27 // pred_fallthru
          _
      $region28: #{tpu_custom_call.1} parent=5 // pred_fallthru
        _
      %p288 = scmp.le.s32.totalorder 2, %s17
      // Predicated region
      $region45: #{tpu_custom_call.1} parent=5 // pred_check
        %p289 = pneg %p288
      $region46: #{tpu_custom_call.1} parent=5 // pred_check_branch
        %291 = sbr.rel (%p289) target = $region48
      $region47: #{tpu_custom_call.1} parent=5 // pred_region
        %s292 = ssub.s32 %s17, 2
        // Predicated region
        $region49: #{tpu_custom_call.1} parent=47 // pred_check
          %p293 = pneg %p127
        $region50: #{tpu_custom_call.1} parent=47 // pred_check_branch
          %295 = sbr.rel (%p293) target = $region52
        $region51: #{tpu_custom_call.1} parent=47 // pred_region
          %s296 = sand.u32 %s112, 1
          %s297 = scalar_lea.sflag [#allocation4], %s296
          %s298 = sand.u32 %s112, 1
          %s299 = smul.addr %s298, 16
          %s300 = scalar_lea.vmem [#allocation7], %s299
          %302 = dma.done %s297, 256
        $region52: #{tpu_custom_call.1} parent=47 // pred_fallthru
          _
      $region48: #{tpu_custom_call.1} parent=5 // pred_fallthru
        _
    $region6: #{tpu_custom_call.1} parent=1 // loop_footer
      %s21 = sadd.s32 1, %s17
    $region7: #{tpu_custom_call.1} parent=1 // loop_footer_branch
      %16 = sbr.rel target = $region3
    $region8: #{tpu_custom_call.1} parent=1 // loop_exit
      _
    %303 = vsyncpa [#allocation3], 1
    %s304 = scalar_lea.sflag [#allocation3], 1
    %305 = vsyncpa %s304, 1
    %306 = vsyncpa [#allocation6], 1
    %s307 = scalar_lea.sflag [#allocation6], 1
    %308 = vsyncpa %s307, 1
    %309 = vsyncpa [#allocation4], 1
    %s310 = scalar_lea.sflag [#allocation4], 1
    %311 = vsyncpa %s310, 1

</llo_original>
